<compile_context>
chip_gen: v6e
topology: v6e:2x2x1
jax: 0.10.0
libtpu: 0.0.40
codegen_flags: <defaults>
</compile_context>

<pallas_src>
import jax
import jax.numpy as jnp
from jax import lax
from jax.experimental import pallas as pl
from jax.experimental.pallas import tpu as pltpu


# Default mass table (index = atomic number; index 0 is a dummy).  Real IUPAC
# masses for Z = 1..18, deterministic 2.5*Z filler beyond (stand-in for
# torchani.MASS; substitute the full 119-entry MASS list for production use).
_REAL = (0.0, 1.008, 4.0026, 6.94, 9.0122, 10.81, 12.011, 14.007, 15.999,
         18.998, 20.180, 22.990, 24.305, 26.982, 28.085, 30.974, 32.06,
         35.45, 39.948)
MASS = _REAL + tuple(2.5 * z for z in range(19, 119))   # len == 119


def _build_lookup(masses_seq, use_arith_tail, max_z):
    """Build the per-tile int32 -> f32 mass lookup (compare/select chain)."""
    limit = min(int(max_z), len(masses_seq) - 1)
    arith = None
    if use_arith_tail and limit >= 19:
        explicit_hi = 18
        arith = (19, limit)            # masses_seq[z] == 2.5*z on this range
    else:
        explicit_hi = limit
    # Skip zero entries: acc starts at 0.0, so a 0.0 mass, Z == -1, Z == 0 and
    # out-of-range Z all fall through to 0.0 -- matching masked_fill_ behaviour.
    entries = tuple((k, float(masses_seq[k])) for k in range(1, explicit_hi + 1)
                    if float(masses_seq[k]) != 0.0)

    def lookup(z):                      # z: int32 sub-chunk held in vregs
        acc = jnp.zeros(z.shape, jnp.float32)
        for k, mk in entries:           # unrolled; mk is a vector immediate
            acc = jnp.where(z == k, jnp.float32(mk), acc)
        if arith is not None:
            lo, hi = arith
            acc = jnp.where((z >= lo) & (z <= hi),
                            jnp.float32(2.5) * z.astype(jnp.float32), acc)
        return acc

    return lookup


def _make_kernel(lookup, block_m, sub_rows):
    """Kernel: process the (block_m, block_a) tile in sub_rows-row chunks."""
    n_full, rem = divmod(block_m, sub_rows)

    def kernel(z_ref, out_ref):
        if n_full > 0:
            def body(r, carry):
                i = pl.multiple_of(r * sub_rows, sub_rows)
                z = z_ref[pl.ds(i, sub_rows), :].astype(jnp.int32)
                out_ref[pl.ds(i, sub_rows), :] = lookup(z)
                return carry
            lax.fori_loop(0, n_full, body, 0,
                          unroll=2 if n_full >= 2 else 1)
        if rem:                          # static remainder chunk
            i0 = n_full * sub_rows
            z = z_ref[pl.ds(i0, rem), :].astype(jnp.int32)
            out_ref[pl.ds(i0, rem), :] = lookup(z)

    return kernel


def _maybe_split_for_multicore(m, a, bm, ba, min_elems=1 << 16):
    """If the grid would be (1,1) on a big-enough array, force >=2 blocks along
    a 'parallel' axis so both v7x TensorCores get work (no-op on v5e/v6e)."""
    if pl.cdiv(m, bm) * pl.cdiv(a, ba) > 1 or m * a < min_elems:
        return bm, ba
    if m >= 64:
        bm = max(32, ((pl.cdiv(m, 2) + 31) // 32) * 32)   # 32-aligned (int8-safe)
    elif a >= 256:
        ba = max(128, ((pl.cdiv(a, 2) + 127) // 128) * 128)
    return bm, ba


def atomic_numbers_to_masses(atomic_numbers: jax.Array,
                             masses=(),
                             *,
                             max_z: int | None = None,
                             block_m: int = 512,
                             block_a: int = 1024,
                             sub_rows: int = 32) -> jax.Array:
    """Pallas equivalent of AtomicNumbersToMasses.forward.

    `masses` is a host-side sequence (the module's fixed buffer); empty means
    the default MASS table, mirroring the PyTorch constructor.  `max_z` caps
    the unrolled lookup (atomic numbers above it map to 0.0).
    """
    # TODO(synk): PyTorch's host-side `assert not (atomic_numbers == 0).any()`
    # has no in-kernel equivalent under jit; Z == 0 simply maps to 0.0.
    masses_seq = tuple(float(x) for x in masses)
    use_default = not masses_seq
    if use_default:
        masses_seq = MASS
    if max_z is None:
        max_z = len(masses_seq) - 1

    # Keep the input in its native narrow integer dtype (int8/int16/int32);
    # only downcast exotic/wide dtypes that Mosaic can't stream efficiently.
    if (not jnp.issubdtype(atomic_numbers.dtype, jnp.integer)
            or atomic_numbers.dtype.itemsize > 4):
        atomic_numbers = atomic_numbers.astype(jnp.int32)

    m, a = atomic_numbers.shape
    # Full-array blocks for small dims (exempt from the (8,128) rule); otherwise
    # big aligned tiles with ragged edges handled by Pallas masking.
    bm = m if m < block_m else block_m
    ba = a if a < block_a else block_a
    bm, ba = _maybe_split_for_multicore(m, a, bm, ba)
    grid = (pl.cdiv(m, bm), pl.cdiv(a, ba))

    lookup = _build_lookup(masses_seq, use_default, max_z)
    kernel = _make_kernel(lookup, bm, sub_rows)

    in_bytes = atomic_numbers.dtype.itemsize
    cost = pl.CostEstimate(flops=45 * m * a, transcendentals=0,
                           bytes_accessed=m * a * (in_bytes + 4))

    return pl.pallas_call(
        kernel,
        out_shape=jax.ShapeDtypeStruct((m, a), jnp.float32),
        grid=grid,
        in_specs=[pl.BlockSpec((bm, ba), lambda i, j: (i, j))],
        out_specs=pl.BlockSpec((bm, ba), lambda i, j: (i, j)),
        compiler_params=pltpu.CompilerParams(
            dimension_semantics=("parallel", "parallel"),
            vmem_limit_bytes=32 * 1024 * 1024,
        ),
        cost_estimate=cost,
    )(atomic_numbers)


def _reference(atomic_numbers: jax.Array, masses) -> jax.Array:
    """Pure-JAX reference matching the PyTorch forward."""
    table = jnp.asarray(masses, dtype=jnp.float32)
    z32 = atomic_numbers.astype(jnp.int32)
    gathered = table[z32]                            # -1 wraps to last entry (like torch)
    return jnp.where(z32 == -1, 0.0, gathered).astype(jnp.float32)


if __name__ == "__main__":
    key = jax.random.PRNGKey(0)

    # Test 1: small single-block case (4 molecules x 16 atoms, dummy atoms = -1),
    # with max_z capped at 18 (typical torchani chemistry).
    z1 = jax.random.randint(key, (4, 16), minval=1, maxval=19, dtype=jnp.int32)
    z1 = z1.at[0, 12:].set(-1)
    z1 = z1.at[3, 5:9].set(-1)
    out1 = jax.block_until_ready(atomic_numbers_to_masses(z1, max_z=18))
    ref1 = _reference(z1, MASS)
    assert out1.shape == z1.shape and out1.dtype == jnp.float32
    assert jnp.allclose(out1, ref1, atol=1e-6), (out1, ref1)

    # Test 2: ragged multi-block case -- small blocks forced so the 2-D grid,
    # edge-block masking, and the arithmetic-tail (Z >= 19) path are exercised.
    z2 = jax.random.randint(jax.random.fold_in(key, 1), (20, 300),
                            minval=1, maxval=119, dtype=jnp.int32)
    z2 = z2.at[7, 250:].set(-1)
    z2 = z2.at[19, :].set(-1)
    out2 = jax.block_until_ready(
        atomic_numbers_to_masses(z2, block_m=8, block_a=128))
    ref2 = _reference(z2, MASS)
    assert out2.shape == z2.shape and out2.dtype == jnp.float32
    assert jnp.allclose(out2, ref2, atol=1e-6), (out2, ref2)

    # Test 3: native int8 input (no host-side upcast), full table range.
    z3 = jax.random.randint(jax.random.fold_in(key, 2), (64, 256),
                            minval=1, maxval=119, dtype=jnp.int32)
    z3 = z3.at[5, 200:].set(-1)
    z3 = z3.astype(jnp.int8)
    out3 = jax.block_until_ready(atomic_numbers_to_masses(z3))
    ref3 = _reference(z3, MASS)
    assert out3.shape == z3.shape and out3.dtype == jnp.float32
    assert jnp.allclose(out3, ref3, atol=1e-6), (out3, ref3)

    # Test 4: custom (non-default) mass table -> plain unrolled chain path.
    custom = (0.0, 1.0, 2.0, 3.5, 4.25, 5.0, 6.75, 7.0, 8.5, 9.125)
    z4 = jax.random.randint(jax.random.fold_in(key, 3), (8, 128),
                            minval=1, maxval=10, dtype=jnp.int32)
    z4 = z4.at[2, 100:].set(-1)
    out4 = jax.block_until_ready(atomic_numbers_to_masses(z4, custom))
    ref4 = _reference(z4, custom)
    assert jnp.allclose(out4, ref4, atol=1e-6), (out4, ref4)

    print("KERNEL_OK")
</pallas_src>

<mosaic_0001>
module attributes {stable_mosaic.version = 11 : i64} {
  func.func @kernel(%arg0: i32, %arg1: i32, %arg2: memref<4x16xi32, #tpu.memory_space<vmem>>, %arg3: memref<4x16xf32, #tpu.memory_space<vmem>>) attributes {dimension_semantics = [#tpu.dimension_semantics<parallel>, #tpu.dimension_semantics<parallel>], iteration_bounds = array<i64: 1, 1>, scalar_prefetch = 0 : i64, scratch_operands = 0 : i64, tpu.core_type = #tpu.core_type<tc>, window_params = [{transform_indices = @transform_0, window_bounds = array<i64: 4, 16>}, {transform_indices = @transform_1, window_bounds = array<i64: 4, 16>}]} {
    %c0 = arith.constant 0 : index
    %c0_0 = arith.constant 0 : index
    %0 = vector.load %arg2[%c0, %c0_0] : memref<4x16xi32, #tpu.memory_space<vmem>>, vector<4x16xi32>
    %cst = arith.constant 0.000000e+00 : f32
    %1 = vector.broadcast %cst : f32 to vector<4x16xf32>
    %c1_i32 = arith.constant 1 : i32
    %2 = vector.broadcast %c1_i32 : i32 to vector<4x16xi32>
    %3 = arith.cmpi eq, %0, %2 : vector<4x16xi32>
    %cst_1 = arith.constant 1.008000e+00 : f32
    %4 = vector.broadcast %cst_1 : f32 to vector<4x16xf32>
    %5 = arith.select %3, %4, %1 : vector<4x16xi1>, vector<4x16xf32>
    %c2_i32 = arith.constant 2 : i32
    %6 = vector.broadcast %c2_i32 : i32 to vector<4x16xi32>
    %7 = arith.cmpi eq, %0, %6 : vector<4x16xi32>
    %cst_2 = arith.constant 4.002600e+00 : f32
    %8 = vector.broadcast %cst_2 : f32 to vector<4x16xf32>
    %9 = arith.select %7, %8, %5 : vector<4x16xi1>, vector<4x16xf32>
    %c3_i32 = arith.constant 3 : i32
    %10 = vector.broadcast %c3_i32 : i32 to vector<4x16xi32>
    %11 = arith.cmpi eq, %0, %10 : vector<4x16xi32>
    %cst_3 = arith.constant 6.940000e+00 : f32
    %12 = vector.broadcast %cst_3 : f32 to vector<4x16xf32>
    %13 = arith.select %11, %12, %9 : vector<4x16xi1>, vector<4x16xf32>
    %c4_i32 = arith.constant 4 : i32
    %14 = vector.broadcast %c4_i32 : i32 to vector<4x16xi32>
    %15 = arith.cmpi eq, %0, %14 : vector<4x16xi32>
    %cst_4 = arith.constant 9.012200e+00 : f32
    %16 = vector.broadcast %cst_4 : f32 to vector<4x16xf32>
    %17 = arith.select %15, %16, %13 : vector<4x16xi1>, vector<4x16xf32>
    %c5_i32 = arith.constant 5 : i32
    %18 = vector.broadcast %c5_i32 : i32 to vector<4x16xi32>
    %19 = arith.cmpi eq, %0, %18 : vector<4x16xi32>
    %cst_5 = arith.constant 1.081000e+01 : f32
    %20 = vector.broadcast %cst_5 : f32 to vector<4x16xf32>
    %21 = arith.select %19, %20, %17 : vector<4x16xi1>, vector<4x16xf32>
    %c6_i32 = arith.constant 6 : i32
    %22 = vector.broadcast %c6_i32 : i32 to vector<4x16xi32>
    %23 = arith.cmpi eq, %0, %22 : vector<4x16xi32>
    %cst_6 = arith.constant 1.201100e+01 : f32
    %24 = vector.broadcast %cst_6 : f32 to vector<4x16xf32>
    %25 = arith.select %23, %24, %21 : vector<4x16xi1>, vector<4x16xf32>
    %c7_i32 = arith.constant 7 : i32
    %26 = vector.broadcast %c7_i32 : i32 to vector<4x16xi32>
    %27 = arith.cmpi eq, %0, %26 : vector<4x16xi32>
    %cst_7 = arith.constant 1.400700e+01 : f32
    %28 = vector.broadcast %cst_7 : f32 to vector<4x16xf32>
    %29 = arith.select %27, %28, %25 : vector<4x16xi1>, vector<4x16xf32>
    %c8_i32 = arith.constant 8 : i32
    %30 = vector.broadcast %c8_i32 : i32 to vector<4x16xi32>
    %31 = arith.cmpi eq, %0, %30 : vector<4x16xi32>
    %cst_8 = arith.constant 1.599900e+01 : f32
    %32 = vector.broadcast %cst_8 : f32 to vector<4x16xf32>
    %33 = arith.select %31, %32, %29 : vector<4x16xi1>, vector<4x16xf32>
    %c9_i32 = arith.constant 9 : i32
    %34 = vector.broadcast %c9_i32 : i32 to vector<4x16xi32>
    %35 = arith.cmpi eq, %0, %34 : vector<4x16xi32>
    %cst_9 = arith.constant 1.899800e+01 : f32
    %36 = vector.broadcast %cst_9 : f32 to vector<4x16xf32>
    %37 = arith.select %35, %36, %33 : vector<4x16xi1>, vector<4x16xf32>
    %c10_i32 = arith.constant 10 : i32
    %38 = vector.broadcast %c10_i32 : i32 to vector<4x16xi32>
    %39 = arith.cmpi eq, %0, %38 : vector<4x16xi32>
    %cst_10 = arith.constant 2.018000e+01 : f32
    %40 = vector.broadcast %cst_10 : f32 to vector<4x16xf32>
    %41 = arith.select %39, %40, %37 : vector<4x16xi1>, vector<4x16xf32>
    %c11_i32 = arith.constant 11 : i32
    %42 = vector.broadcast %c11_i32 : i32 to vector<4x16xi32>
    %43 = arith.cmpi eq, %0, %42 : vector<4x16xi32>
    %cst_11 = arith.constant 2.299000e+01 : f32
    %44 = vector.broadcast %cst_11 : f32 to vector<4x16xf32>
    %45 = arith.select %43, %44, %41 : vector<4x16xi1>, vector<4x16xf32>
    %c12_i32 = arith.constant 12 : i32
    %46 = vector.broadcast %c12_i32 : i32 to vector<4x16xi32>
    %47 = arith.cmpi eq, %0, %46 : vector<4x16xi32>
    %cst_12 = arith.constant 2.430500e+01 : f32
    %48 = vector.broadcast %cst_12 : f32 to vector<4x16xf32>
    %49 = arith.select %47, %48, %45 : vector<4x16xi1>, vector<4x16xf32>
    %c13_i32 = arith.constant 13 : i32
    %50 = vector.broadcast %c13_i32 : i32 to vector<4x16xi32>
    %51 = arith.cmpi eq, %0, %50 : vector<4x16xi32>
    %cst_13 = arith.constant 2.698200e+01 : f32
    %52 = vector.broadcast %cst_13 : f32 to vector<4x16xf32>
    %53 = arith.select %51, %52, %49 : vector<4x16xi1>, vector<4x16xf32>
    %c14_i32 = arith.constant 14 : i32
    %54 = vector.broadcast %c14_i32 : i32 to vector<4x16xi32>
    %55 = arith.cmpi eq, %0, %54 : vector<4x16xi32>
    %cst_14 = arith.constant 2.808500e+01 : f32
    %56 = vector.broadcast %cst_14 : f32 to vector<4x16xf32>
    %57 = arith.select %55, %56, %53 : vector<4x16xi1>, vector<4x16xf32>
    %c15_i32 = arith.constant 15 : i32
    %58 = vector.broadcast %c15_i32 : i32 to vector<4x16xi32>
    %59 = arith.cmpi eq, %0, %58 : vector<4x16xi32>
    %cst_15 = arith.constant 3.097400e+01 : f32
    %60 = vector.broadcast %cst_15 : f32 to vector<4x16xf32>
    %61 = arith.select %59, %60, %57 : vector<4x16xi1>, vector<4x16xf32>
    %c16_i32 = arith.constant 16 : i32
    %62 = vector.broadcast %c16_i32 : i32 to vector<4x16xi32>
    %63 = arith.cmpi eq, %0, %62 : vector<4x16xi32>
    %cst_16 = arith.constant 3.206000e+01 : f32
    %64 = vector.broadcast %cst_16 : f32 to vector<4x16xf32>
    %65 = arith.select %63, %64, %61 : vector<4x16xi1>, vector<4x16xf32>
    %c17_i32 = arith.constant 17 : i32
    %66 = vector.broadcast %c17_i32 : i32 to vector<4x16xi32>
    %67 = arith.cmpi eq, %0, %66 : vector<4x16xi32>
    %cst_17 = arith.constant 3.545000e+01 : f32
    %68 = vector.broadcast %cst_17 : f32 to vector<4x16xf32>
    %69 = arith.select %67, %68, %65 : vector<4x16xi1>, vector<4x16xf32>
    %c18_i32 = arith.constant 18 : i32
    %70 = vector.broadcast %c18_i32 : i32 to vector<4x16xi32>
    %71 = arith.cmpi eq, %0, %70 : vector<4x16xi32>
    %cst_18 = arith.constant 3.994800e+01 : f32
    %72 = vector.broadcast %cst_18 : f32 to vector<4x16xf32>
    %73 = arith.select %71, %72, %69 : vector<4x16xi1>, vector<4x16xf32>
    %c0_19 = arith.constant 0 : index
    %c0_20 = arith.constant 0 : index
    %74 = vector.load %arg3[%c0_19, %c0_20] : memref<4x16xf32, #tpu.memory_space<vmem>>, vector<4x16xf32>
    tpu.vector_store %arg3[%c0_19, %c0_20], %73 {strides = array<i32>} : memref<4x16xf32, #tpu.memory_space<vmem>>, vector<4x16xf32>,
    return
  }
  func.func @transform_0(%arg0: i32, %arg1: i32) -> (i32, i32) {
    %c0_i32 = arith.constant 0 : i32
    return %arg0, %arg1 : i32, i32
  }
  func.func @transform_1(%arg0: i32, %arg1: i32) -> (i32, i32) {
    %c0_i32 = arith.constant 0 : i32
    return %arg0, %arg1 : i32, i32
  }
}

</mosaic_0001>

<llo_original>
// kernel: tpu_custom_call.1
$region0: #{tpu_custom_call.1}
  #allocation0 [shape = 'u32[]', space=smem, size = 0x4, offset = 0x4, fixed_abs, tag = 'smem constant byte address 0x4 - core index']
  #allocation1 [shape = 'u32[144,128]{1,0:T(1,128)}', space=vmem, size = 0x12000, scoped, tag = 'internal scratch']
  %s0 = inlined_call_operand.hbm [shape: s32[4,16], index: 0, kind: input, shape index: {}]
  %s1 = inlined_call_operand.hbm [shape: f32[4,16], index: 1, kind: output, shape index: {}]
  %s2 = sld [smem:[#allocation0]]
  $region18: #{tpu_custom_call.1} parent=0
    _
  %s4 = ssub.s32 1, %s2
  %s5 = scalar_select 0, %s4, %s2
  $region1: #{tpu_custom_call.1} parent=0
    #allocation2 [shape = 'u8[2048]{0}', space=vmem, size = 0x800, scoped, tag = 'input window, operand 0, single buffered']
    #allocation3 [shape = 's32[1]{0}', space=sflag, size = 0x4, scoped, tag = 'scoped memory for tpu_custom_call.1']
    #allocation4 [shape = 's32[1]{0}', space=sflag, size = 0x4, scoped, tag = 'scoped memory for tpu_custom_call.1']
    #allocation5 [shape = 'u8[2048]{0}', space=vmem, size = 0x800, scoped, tag = 'output window, operand 0, single buffered']
    %6 = vsyncpa [#allocation3], 0
    %7 = vsyncpa [#allocation4], 0
    // Predicated region
    $region2: #{tpu_custom_call.1} parent=1 // pred_check
      _
    $region3: #{tpu_custom_call.1} parent=1 // pred_check_branch
      %9 = sbr.rel (0) target = $region5
    $region4: #{tpu_custom_call.1} parent=1 // pred_region
      %s11 = ssub.s32 64, 64
      %12 = vsyncadd [#allocation3], %s11
      %s14 = sshll.u32 [#allocation2], 4
      %s15 = int_to_ptr.vmem [resolvable:$true] %s14
      %17 = dma.hbm_to_vmem [thread:$0]  %s0, 64, %s15, [#allocation3]
    $region5: #{tpu_custom_call.1} parent=1 // pred_fallthru
      _
    // Predicated region
    $region6: #{tpu_custom_call.1} parent=1 // pred_check
      _
    $region7: #{tpu_custom_call.1} parent=1 // pred_check_branch
      %19 = sbr.rel (0) target = $region9
    $region8: #{tpu_custom_call.1} parent=1 // pred_region
      %20 = dma.done [#allocation3], 64
    $region9: #{tpu_custom_call.1} parent=1 // pred_fallthru
      _
    %v21 = vld [vmem:[#allocation2] sm:$0xf]
    %vm22 = vcmp.eq.s32.totalorder %v21, 1
    %v23 = vsel %vm22, 1.008, 0.0
    %vm24 = vcmp.eq.s32.totalorder %v21, 2
    %v25 = vsel %vm24, 4.0026, %v23
    %vm26 = vcmp.eq.s32.totalorder %v21, 3
    %v27 = vsel %vm26, 6.94, %v25
    %vm28 = vcmp.eq.s32.totalorder %v21, 4
    %v29 = vsel %vm28, 9.0122, %v27
    %vm30 = vcmp.eq.s32.totalorder %v21, 5
    %v31 = vsel %vm30, 10.81, %v29
    %vm32 = vcmp.eq.s32.totalorder %v21, 6
    %v33 = vsel %vm32, 12.011, %v31
    %vm34 = vcmp.eq.s32.totalorder %v21, 7
    %v35 = vsel %vm34, 14.007, %v33
    %vm36 = vcmp.eq.s32.totalorder %v21, 8
    %v37 = vsel %vm36, 15.999, %v35
    %vm38 = vcmp.eq.s32.totalorder %v21, 9
    %v39 = vsel %vm38, 18.998, %v37
    %vm40 = vcmp.eq.s32.totalorder %v21, 10
    %v41 = vsel %vm40, 20.18, %v39
    %vm42 = vcmp.eq.s32.totalorder %v21, 11
    %v43 = vsel %vm42, 22.99, %v41
    %vm44 = vcmp.eq.s32.totalorder %v21, 12
    %v45 = vsel %vm44, 24.305, %v43
    %vm46 = vcmp.eq.s32.totalorder %v21, 13
    %v47 = vsel %vm46, 26.982, %v45
    %vm48 = vcmp.eq.s32.totalorder %v21, 14
    %v49 = vsel %vm48, 28.085, %v47
    %vm50 = vcmp.eq.s32.totalorder %v21, 15
    %v51 = vsel %vm50, 30.974, %v49
    %vm52 = vcmp.eq.s32.totalorder %v21, 16
    %v53 = vsel %vm52, 32.06, %v51
    %vm54 = vcmp.eq.s32.totalorder %v21, 17
    %v55 = vsel %vm54, 35.45, %v53
    %vm56 = vcmp.eq.s32.totalorder %v21, 18
    %v57 = vsel %vm56, 39.948, %v55
    %vm58 = vcmask 125952
    %59 = vst.msk [vmem:[#allocation5] sm:$0xf] %vm58, %v57
    // Predicated region
    $region10: #{tpu_custom_call.1} parent=1 // pred_check
      _
    $region11: #{tpu_custom_call.1} parent=1 // pred_check_branch
      %61 = sbr.rel (0) target = $region13
    $region12: #{tpu_custom_call.1} parent=1 // pred_region
      %s63 = ssub.s32 64, 64
      %64 = vsyncadd [#allocation4], %s63
      %s66 = sshll.u32 [#allocation5], 4
      %s67 = int_to_ptr.vmem [resolvable:$true] %s66
      %69 = dma.vmem_to_hbm [thread:$0]  %s67, 64, %s1, [#allocation4]
    $region13: #{tpu_custom_call.1} parent=1 // pred_fallthru
      _
    // Predicated region
    $region14: #{tpu_custom_call.1} parent=1 // pred_check
      _
    $region15: #{tpu_custom_call.1} parent=1 // pred_check_branch
      %71 = sbr.rel (0) target = $region17
    $region16: #{tpu_custom_call.1} parent=1 // pred_region
      %72 = dma.done [#allocation4], 64
    $region17: #{tpu_custom_call.1} parent=1 // pred_fallthru
      _
    %73 = vsyncpa [#allocation3], 1
    %74 = vsyncpa [#allocation4], 1

</llo_original>
